<compile_context>
chip_gen: v6e
topology: v6e:2x2x1
jax: 0.10.0
libtpu: 0.0.40
codegen_flags: <defaults>
</compile_context>

<pallas_src>
import functools

import jax
import jax.numpy as jnp
from jax.experimental import pallas as pl
from jax.experimental.pallas import tpu as pltpu

NDIM_DISC = 26      # emotic discrete-emotion dimension
LDISC_C = 1.2       # params.LDISC_C log-smoothing constant


def _discrete_loss_kernel(inp_ref, tgt_ref, out_ref, sse_ref, cls_ref,
                          *, n_total, tile_n):
    i = pl.program_id(0)

    # --- init resident accumulators on the first tile -----------------------
    @pl.when(i == 0)
    def _():
        sse_ref[...] = jnp.zeros_like(sse_ref)
        cls_ref[...] = jnp.zeros_like(cls_ref)

    # --- accumulate this tile's contribution (f32 accumulation) -------------
    x = inp_ref[...].astype(jnp.float32)          # (tile_n, D)
    t = tgt_ref[...].astype(jnp.float32)          # (tile_n, D)

    # mask out rows past the true batch size on a ragged last tile
    row = jax.lax.broadcasted_iota(jnp.int32, x.shape, 0) + i * tile_n
    valid = row < n_total                          # (tile_n, D) bool

    diff = jnp.where(valid, x - t, 0.0)
    t_m = jnp.where(valid, t, 0.0)

    sse_ref[...] += jnp.sum(diff * diff, axis=0, keepdims=True)   # (1, D)
    cls_ref[...] += jnp.sum(t_m, axis=0, keepdims=True)           # (1, D)

    # --- finalize on the last tile: weights + weighted scalar loss ----------
    @pl.when(i == pl.num_programs(0) - 1)
    def _():
        sum_class = cls_ref[...]
        mask = (sum_class > 0.5).astype(jnp.float32)
        prev_w = pl.reciprocal(jnp.log(sum_class + LDISC_C), approx=True)
        disc_w = mask * prev_w
        loss = sse_ref[...] * (1.0 / float(n_total))
        out_ref[0, 0] = jnp.sum(loss * disc_w)


def discrete_loss(input_, target, *, tile_n=2048):
    """Pallas-backed DiscreteLoss.forward (weight=None). Returns a scalar.

    Inputs are consumed in their native dtype (e.g. bf16) and accumulated in
    f32 inside the kernel.
    """
    N, D = input_.shape
    assert target.shape == (N, D)

    # Tile the batch dimension: either the full batch (small N) or a
    # sublane-aligned tile (multiple of 8) for large N.
    tn = N if N <= tile_n else (tile_n // 8) * 8
    grid = (pl.cdiv(N, tn),)

    in_itemsize = jnp.dtype(input_.dtype).itemsize
    tgt_itemsize = jnp.dtype(target.dtype).itemsize
    cost = pl.CostEstimate(
        flops=3 * N * D,                      # diff, square, accumulate
        transcendentals=2 * D,                # log + reciprocal per class
        bytes_accessed=N * D * (in_itemsize + tgt_itemsize) + 4,
    )

    kernel = functools.partial(_discrete_loss_kernel, n_total=N, tile_n=tn)

    out = pl.pallas_call(
        kernel,
        out_shape=jax.ShapeDtypeStruct((1, 1), jnp.float32),
        grid=grid,
        in_specs=[
            pl.BlockSpec((tn, D), lambda i: (i, 0)),
            pl.BlockSpec((tn, D), lambda i: (i, 0)),
        ],
        # Scalar result lives in SMEM: no padded VMEM tile writeback.
        out_specs=pl.BlockSpec(memory_space=pltpu.SMEM),
        scratch_shapes=[
            pltpu.VMEM((1, D), jnp.float32),   # sum of squared error per class
            pltpu.VMEM((1, D), jnp.float32),   # sum of target per class
        ],
        compiler_params=pltpu.CompilerParams(
            dimension_semantics=("arbitrary",),   # reduction over batch tiles
        ),
        cost_estimate=cost,
    )(input_, target)
    return out[0, 0]


def _reference(input_, target):
    """Pure-JAX reference mirroring the PyTorch forward (for sanity check)."""
    x = input_.astype(jnp.float32)
    t = target.astype(jnp.float32)
    n = x.shape[0]
    sum_class = jnp.sum(t, axis=0)
    mask = (sum_class > 0.5).astype(jnp.float32)
    prev_w = 1.0 / jnp.log(sum_class + LDISC_C)
    disc_w = mask * prev_w
    loss = jnp.sum((x - t) ** 2, axis=0) / n
    return jnp.sum(loss * disc_w)


if __name__ == "__main__":
    key = jax.random.PRNGKey(0)
    k_in, k_tgt = jax.random.split(key)

    N = 8                      # small batch
    D = NDIM_DISC              # 26 discrete emotion classes

    # model scores and binary multi-label targets
    x = jax.random.uniform(k_in, (N, D), dtype=jnp.float32)
    tgt = (jax.random.uniform(k_tgt, (N, D)) > 0.6).astype(jnp.float32)

    # f32 path
    w_loss = discrete_loss(x, tgt)
    jax.block_until_ready(w_loss)
    ref = _reference(x, tgt)
    # approx reciprocal (EUP) -> relax tolerance slightly vs exact f32 divide
    assert jnp.allclose(w_loss, ref, rtol=2e-3, atol=2e-3), (w_loss, ref)

    # bf16 path: native-dtype inputs go straight into the kernel (no wrapper
    # upcast); accumulation inside stays f32.
    x_bf16 = x.astype(jnp.bfloat16)
    w_loss_bf16 = discrete_loss(x_bf16, tgt.astype(jnp.bfloat16))
    jax.block_until_ready(w_loss_bf16)
    ref_bf16 = _reference(x_bf16, tgt.astype(jnp.bfloat16))
    assert jnp.allclose(w_loss_bf16, ref_bf16, rtol=1e-2, atol=1e-2), (
        w_loss_bf16, ref_bf16)

    print("KERNEL_OK")
</pallas_src>

<mosaic_0001>
module attributes {stable_mosaic.version = 11 : i64} {
  func.func @_discrete_loss_kernel(%arg0: i32, %arg1: memref<8x26xf32, #tpu.memory_space<vmem>>, %arg2: memref<8x26xf32, #tpu.memory_space<vmem>>, %arg3: memref<1x1xf32, #tpu.memory_space<smem>>, %arg4: memref<1x26xf32, #tpu.memory_space<vmem>>, %arg5: memref<1x26xf32, #tpu.memory_space<vmem>>) attributes {dimension_semantics = [#tpu.dimension_semantics<arbitrary>], iteration_bounds = array<i64: 1>, scalar_prefetch = 0 : i64, scratch_operands = 2 : i64, tpu.core_type = #tpu.core_type<tc>, window_params = [{transform_indices = @transform_0, window_bounds = array<i64: 8, 26>}, {transform_indices = @transform_1, window_bounds = array<i64: 8, 26>}, {transform_indices = @transform_2, window_bounds = array<i64: 1, 1>}]} {
    %c0_i32 = arith.constant 0 : i32
    %0 = arith.cmpi eq, %arg0, %c0_i32 : i32
    %1 = arith.extui %0 : i1 to i32
    %c0_i32_0 = arith.constant 0 : i32
    %2 = arith.cmpi ne, %1, %c0_i32_0 : i32
    scf.if %2 {
      %cst_18 = arith.constant 0.000000e+00 : f32
      %30 = vector.broadcast %cst_18 : f32 to vector<1x26xf32>
      %c0_19 = arith.constant 0 : index
      %c0_20 = arith.constant 0 : index
      %31 = vector.load %arg4[%c0_19, %c0_20] : memref<1x26xf32, #tpu.memory_space<vmem>>, vector<1x26xf32>
      tpu.vector_store %arg4[%c0_19, %c0_20], %30 {strides = array<i32>} : memref<1x26xf32, #tpu.memory_space<vmem>>, vector<1x26xf32>,
      %cst_21 = arith.constant 0.000000e+00 : f32
      %32 = vector.broadcast %cst_21 : f32 to vector<1x26xf32>
      %c0_22 = arith.constant 0 : index
      %c0_23 = arith.constant 0 : index
      %33 = vector.load %arg5[%c0_22, %c0_23] : memref<1x26xf32, #tpu.memory_space<vmem>>, vector<1x26xf32>
      tpu.vector_store %arg5[%c0_22, %c0_23], %32 {strides = array<i32>} : memref<1x26xf32, #tpu.memory_space<vmem>>, vector<1x26xf32>,
    } else {
    }
    %c0 = arith.constant 0 : index
    %c0_1 = arith.constant 0 : index
    %3 = vector.load %arg1[%c0, %c0_1] : memref<8x26xf32, #tpu.memory_space<vmem>>, vector<8x26xf32>
    %c0_2 = arith.constant 0 : index
    %c0_3 = arith.constant 0 : index
    %4 = vector.load %arg2[%c0_2, %c0_3] : memref<8x26xf32, #tpu.memory_space<vmem>>, vector<8x26xf32>
    %5 = tpu.iota {dimensions = array<i32: 0>} : vector<8x26xi32>
    %c8_i32 = arith.constant 8 : i32
    %6 = arith.muli %arg0, %c8_i32 : i32
    %7 = vector.broadcast %6 : i32 to vector<8x26xi32>
    %8 = arith.addi %5, %7 : vector<8x26xi32>
    %c8_i32_4 = arith.constant 8 : i32
    %9 = vector.broadcast %c8_i32_4 : i32 to vector<8x26xi32>
    %10 = arith.cmpi slt, %8, %9 : vector<8x26xi32>
    %11 = arith.subf %3, %4 : vector<8x26xf32>
    %cst = arith.constant 0.000000e+00 : f32
    %12 = vector.broadcast %cst : f32 to vector<8x26xf32>
    %13 = arith.select %10, %11, %12 : vector<8x26xi1>, vector<8x26xf32>
    %cst_5 = arith.constant 0.000000e+00 : f32
    %14 = vector.broadcast %cst_5 : f32 to vector<8x26xf32>
    %15 = arith.select %10, %4, %14 : vector<8x26xi1>, vector<8x26xf32>
    %c0_6 = arith.constant 0 : index
    %c0_7 = arith.constant 0 : index
    %16 = vector.load %arg4[%c0_6, %c0_7] : memref<1x26xf32, #tpu.memory_space<vmem>>, vector<1x26xf32>
    %17 = arith.mulf %13, %13 : vector<8x26xf32>
    %cst_8 = arith.constant dense<0.000000e+00> : vector<26xf32>
    %18 = vector.multi_reduction <add>, %17, %cst_8 [0] : vector<8x26xf32> to vector<26xf32>
    %19 = vector.shape_cast %18 : vector<26xf32> to vector<1x26xf32>
    %20 = arith.addf %16, %19 : vector<1x26xf32>
    %c0_9 = arith.constant 0 : index
    %c0_10 = arith.constant 0 : index
    %21 = vector.load %arg4[%c0_9, %c0_10] : memref<1x26xf32, #tpu.memory_space<vmem>>, vector<1x26xf32>
    tpu.vector_store %arg4[%c0_9, %c0_10], %20 {strides = array<i32>} : memref<1x26xf32, #tpu.memory_space<vmem>>, vector<1x26xf32>,
    %c0_11 = arith.constant 0 : index
    %c0_12 = arith.constant 0 : index
    %22 = vector.load %arg5[%c0_11, %c0_12] : memref<1x26xf32, #tpu.memory_space<vmem>>, vector<1x26xf32>
    %cst_13 = arith.constant dense<0.000000e+00> : vector<26xf32>
    %23 = vector.multi_reduction <add>, %15, %cst_13 [0] : vector<8x26xf32> to vector<26xf32>
    %24 = vector.shape_cast %23 : vector<26xf32> to vector<1x26xf32>
    %25 = arith.addf %22, %24 : vector<1x26xf32>
    %c0_14 = arith.constant 0 : index
    %c0_15 = arith.constant 0 : index
    %26 = vector.load %arg5[%c0_14, %c0_15] : memref<1x26xf32, #tpu.memory_space<vmem>>, vector<1x26xf32>
    tpu.vector_store %arg5[%c0_14, %c0_15], %25 {strides = array<i32>} : memref<1x26xf32, #tpu.memory_space<vmem>>, vector<1x26xf32>,
    %c0_i32_16 = arith.constant 0 : i32
    %27 = arith.cmpi eq, %arg0, %c0_i32_16 : i32
    %28 = arith.extui %27 : i1 to i32
    %c0_i32_17 = arith.constant 0 : i32
    %29 = arith.cmpi ne, %28, %c0_i32_17 : i32
    scf.if %29 {
      %c0_18 = arith.constant 0 : index
      %c0_19 = arith.constant 0 : index
      %30 = vector.load %arg5[%c0_18, %c0_19] : memref<1x26xf32, #tpu.memory_space<vmem>>, vector<1x26xf32>
      %cst_20 = arith.constant 5.000000e-01 : f32
      %31 = vector.broadcast %cst_20 : f32 to vector<1x26xf32>
      %32 = arith.cmpf ogt, %30, %31 : vector<1x26xf32>
      %33 = arith.extui %32 : vector<1x26xi1> to vector<1x26xi32>
      %34 = arith.sitofp %33 : vector<1x26xi32> to vector<1x26xf32>
      %cst_21 = arith.constant 1.200000e+00 : f32
      %35 = vector.broadcast %cst_21 : f32 to vector<1x26xf32>
      %36 = arith.addf %30, %35 : vector<1x26xf32>
      %37 = math.log %36 : vector<1x26xf32>
      %38 = tpu.reciprocal %37 {approx = true} : vector<1x26xf32> -> vector<1x26xf32>
      %39 = arith.mulf %34, %38 : vector<1x26xf32>
      %c0_22 = arith.constant 0 : index
      %c0_23 = arith.constant 0 : index
      %40 = vector.load %arg4[%c0_22, %c0_23] : memref<1x26xf32, #tpu.memory_space<vmem>>, vector<1x26xf32>
      %cst_24 = arith.constant 1.250000e-01 : f32
      %41 = vector.broadcast %cst_24 : f32 to vector<1x26xf32>
      %42 = arith.mulf %40, %41 : vector<1x26xf32>
      %43 = arith.mulf %42, %39 : vector<1x26xf32>
      %44 = vector.shape_cast %43 : vector<1x26xf32> to vector<1x1x26xf32>
      %cst_25 = arith.constant dense<0.000000e+00> : vector<1xf32>
      %45 = vector.multi_reduction <add>, %44, %cst_25 [1, 2] : vector<1x1x26xf32> to vector<1xf32>
      %46 = vector.shape_cast %45 : vector<1xf32> to vector<1x1x1xf32>
      %47 = vector.extract %46[0, 0, 0] : f32 from vector<1x1x1xf32>
      %c0_26 = arith.constant 0 : index
      %c0_27 = arith.constant 0 : index
      %48 = memref.load %arg3[%c0_26, %c0_27] : memref<1x1xf32, #tpu.memory_space<smem>>
      memref.store %47, %arg3[%c0_26, %c0_27] : memref<1x1xf32, #tpu.memory_space<smem>>
    } else {
    }
    return
  }
  func.func @transform_0(%arg0: i32) -> (i32, i32) {
    %c0_i32 = arith.constant 0 : i32
    %c0_i32_0 = arith.constant 0 : i32
    return %arg0, %c0_i32 : i32, i32
  }
  func.func @transform_1(%arg0: i32) -> (i32, i32) {
    %c0_i32 = arith.constant 0 : i32
    %c0_i32_0 = arith.constant 0 : i32
    return %arg0, %c0_i32 : i32, i32
  }
  func.func @transform_2(%arg0: i32) -> (i32, i32) {
    %c0_i32 = arith.constant 0 : i32
    %c0_i32_0 = arith.constant 0 : i32
    %c0_i32_1 = arith.constant 0 : i32
    return %c0_i32, %c0_i32_0 : i32, i32
  }
}

</mosaic_0001>

<llo_original>
// kernel: tpu_custom_call.1
$region0: #{tpu_custom_call.1}
  #allocation0 [shape = 'u32[]', space=smem, size = 0x4, offset = 0x4, fixed_abs, tag = 'smem constant byte address 0x4 - core index']
  #allocation1 [shape = 'u32[144,128]{1,0:T(1,128)}', space=vmem, size = 0x12000, scoped, tag = 'internal scratch']
  #allocation2 [shape = 'f32[1,26]{1,0:T(1,128)}', space=vmem, size = 0x200, scoped, tag = 'scratch operand']
  #allocation3 [shape = 'f32[1,26]{1,0:T(1,128)}', space=vmem, size = 0x200, scoped, tag = 'scratch operand']
  %s0 = inlined_call_operand.hbm [shape: f32[8,26], index: 0, kind: input, shape index: {}]
  %s1 = inlined_call_operand.hbm [shape: f32[8,26], index: 1, kind: input, shape index: {}]
  %s2 = inlined_call_operand.hbm [shape: f32[1,1], index: 2, kind: output, shape index: {}]
  %s3 = sld [smem:[#allocation0]]
  $region34: #{tpu_custom_call.1} parent=0
    _
  %s5 = ssub.s32 1, %s3
  %s6 = scalar_select 0, %s5, %s3
  $region1: #{tpu_custom_call.1} parent=0
    #allocation4 [shape = 'u8[4096]{0}', space=vmem, size = 0x1000, scoped, tag = 'input window, operand 0, single buffered']
    #allocation5 [shape = 's32[1]{0}', space=sflag, size = 0x4, scoped, tag = 'scoped memory for tpu_custom_call.1']
    #allocation6 [shape = 's32[1]{0}', space=sflag, size = 0x4, scoped, tag = 'scoped memory for tpu_custom_call.1']
    #allocation7 [shape = 'u8[4096]{0}', space=vmem, size = 0x1000, scoped, tag = 'input window, operand 1, single buffered']
    #allocation8 [shape = 's32[1]{0}', space=sflag, size = 0x4, scoped, tag = 'scoped memory for tpu_custom_call.1']
    #allocation9 [shape = 'u8[512]{0}', space=smem, size = 0x200, scoped, tag = 'output window, operand 0, single buffered']
    %7 = vsyncpa [#allocation5], 0
    %8 = vsyncpa [#allocation8], 0
    %9 = vsyncpa [#allocation6], 0
    // Predicated region
    $region2: #{tpu_custom_call.1} parent=1 // pred_check
      _
    $region3: #{tpu_custom_call.1} parent=1 // pred_check_branch
      %11 = sbr.rel (0) target = $region5
    $region4: #{tpu_custom_call.1} parent=1 // pred_region
      %s13 = ssub.s32 128, 128
      %14 = vsyncadd [#allocation5], %s13
      %s16 = sshll.u32 [#allocation4], 4
      %s17 = int_to_ptr.vmem [resolvable:$true] %s16
      %19 = dma.hbm_to_vmem [thread:$0]  %s0, 128, %s17, [#allocation5]
    $region5: #{tpu_custom_call.1} parent=1 // pred_fallthru
      _
    // Predicated region
    $region6: #{tpu_custom_call.1} parent=1 // pred_check
      _
    $region7: #{tpu_custom_call.1} parent=1 // pred_check_branch
      %21 = sbr.rel (0) target = $region9
    $region8: #{tpu_custom_call.1} parent=1 // pred_region
      %s23 = ssub.s32 128, 128
      %24 = vsyncadd [#allocation8], %s23
      %s26 = sshll.u32 [#allocation7], 4
      %s27 = int_to_ptr.vmem [resolvable:$true] %s26
      %29 = dma.hbm_to_vmem [thread:$0]  %s1, 128, %s27, [#allocation8]
    $region9: #{tpu_custom_call.1} parent=1 // pred_fallthru
      _
    // Predicated region
    $region10: #{tpu_custom_call.1} parent=1 // pred_check
      _
    $region11: #{tpu_custom_call.1} parent=1 // pred_check_branch
      %31 = sbr.rel (0) target = $region13
    $region12: #{tpu_custom_call.1} parent=1 // pred_region
      %32 = dma.done [#allocation5], 128
    $region13: #{tpu_custom_call.1} parent=1 // pred_fallthru
      _
    // Predicated region
    $region14: #{tpu_custom_call.1} parent=1 // pred_check
      _
    $region15: #{tpu_custom_call.1} parent=1 // pred_check_branch
      %34 = sbr.rel (0) target = $region17
    $region16: #{tpu_custom_call.1} parent=1 // pred_region
      %35 = dma.done [#allocation8], 128
    $region17: #{tpu_custom_call.1} parent=1 // pred_fallthru
      _
    %p36 = scmp.eq.s32.totalorder 0, 0
    // Predicated region
    $region18: #{tpu_custom_call.1} parent=1 // pred_check
      %p37 = pneg %p36
    $region19: #{tpu_custom_call.1} parent=1 // pred_check_branch
      %39 = sbr.rel (%p37) target = $region21
    $region20: #{tpu_custom_call.1} parent=1 // pred_region
      %vm40 = vcmask 204800
      %41 = vst.msk [vmem:[#allocation2] sm:$0x1] %vm40, 0.0
      %42 = vst.msk [vmem:[#allocation3] sm:$0x1] %vm40, 0.0
    $region21: #{tpu_custom_call.1} parent=1 // pred_fallthru
      _
    %v43 = vld [vmem:[#allocation4] sm:$0xff]
    %v44 = vld [vmem:[#allocation7] sm:$0xff]
    %v45 = vlaneseq
    %v46 = vshrl.u32 %v45, 7
    %s47 = smul.u32 0, 8
    %v48 = vstv %s47
    %v49 = vadd.s32 %v46, %v48
    %vm50 = vcmp.lt.s32.totalorder %v49, 8
    %v51 = vsub.f32 %v43, %v44
    %v52 = vsel %vm50, %v51, 0.0
    %v53 = vsel %vm50, %v44, 0.0
    %v54 = vld [vmem:[#allocation2] sm:$0x1]
    %v55 = vmul.f32 %v52, %v52
    %vm56 = vcmask 211968
    %v57 = vsel %vm56, %v55, 0.0
    %v58 = vrot.slane %v57, 4
    %v59 = vadd.f32 %v57, %v58
    %v60 = vrot.slane %v59, 2
    %v61 = vadd.f32 %v59, %v60
    %v62 = vrot.slane %v61, 1
    %v63 = vadd.f32 %v61, %v62
    %v64 = vadd.f32 %v54, %v63
    %vm65 = vcmask 204800
    %66 = vst.msk [vmem:[#allocation2] sm:$0x1] %vm65, %v64
    %v67 = vld [vmem:[#allocation3] sm:$0x1]
    %v68 = vsel %vm56, %v53, 0.0
    %v69 = vrot.slane %v68, 4
    %v70 = vadd.f32 %v68, %v69
    %v71 = vrot.slane %v70, 2
    %v72 = vadd.f32 %v70, %v71
    %v73 = vrot.slane %v72, 1
    %v74 = vadd.f32 %v72, %v73
    %v75 = vadd.f32 %v67, %v74
    %76 = vst.msk [vmem:[#allocation3] sm:$0x1] %vm65, %v75
    // Predicated region
    $region22: #{tpu_custom_call.1} parent=1 // pred_check
      %p77 = pneg %p36
    $region23: #{tpu_custom_call.1} parent=1 // pred_check_branch
      %79 = sbr.rel (%p77) target = $region25
    $region24: #{tpu_custom_call.1} parent=1 // pred_region
      %v80 = vld [vmem:[#allocation3] sm:$0x1]
      %vm81 = vcmp.gt.f32.partialorder %v80, 0.5
      %v82 = vsel %vm81, 1, 0
      %v83 = vcvt.s32.f32 %v82
      %v84 = vadd.f32 %v80, 1.2
      %v85 = vlog2.pop %v84
      %v86 = vmul.f32 %v85, 0.6931472
      %v87 = vrcp.pop %v86
      %v88 = vmul.f32 %v83, %v87
      %v89 = vld [vmem:[#allocation2] sm:$0x1]
      %v90 = vmul.f32 %v89, 0.125
      %v91 = vmul.f32 %v90, %v88
      %v92 = vsel %vm65, %v91, 0.0
      %93 = vadd.xlane.f32.xlu0 %v92
      %v94 = vpop.xlane.xlu0 %93
      %v95 = vrot.slane %v94, 4
      %v96 = vadd.f32 %v94, %v95
      %v97 = vrot.slane %v96, 2
      %v98 = vadd.f32 %v96, %v97
      %v99 = vrot.slane %v98, 1
      %v100 = vadd.f32 %v98, %v99
      %s101 = vtos %v100
      %s102 = scalar_lea.smem [#allocation9], 0
      %103 = sst [smem:[%s102]] %s101
    $region25: #{tpu_custom_call.1} parent=1 // pred_fallthru
      _
    // Predicated region
    $region26: #{tpu_custom_call.1} parent=1 // pred_check
      _
    $region27: #{tpu_custom_call.1} parent=1 // pred_check_branch
      %105 = sbr.rel (0) target = $region29
    $region28: #{tpu_custom_call.1} parent=1 // pred_region
      %s107 = ssub.s32 16, 16
      %108 = vsyncadd [#allocation6], %s107
      %111 = dma.smem_to_hbm [#allocation9], 16, %s2, [#allocation6]
    $region29: #{tpu_custom_call.1} parent=1 // pred_fallthru
      _
    // Predicated region
    $region30: #{tpu_custom_call.1} parent=1 // pred_check
      _
    $region31: #{tpu_custom_call.1} parent=1 // pred_check_branch
      %113 = sbr.rel (0) target = $region33
    $region32: #{tpu_custom_call.1} parent=1 // pred_region
      %114 = dma.done [#allocation6], 16
    $region33: #{tpu_custom_call.1} parent=1 // pred_fallthru
      _
    %115 = sfence
    %116 = vsyncpa [#allocation5], 1
    %117 = vsyncpa [#allocation8], 1
    %118 = vsyncpa [#allocation6], 1

</llo_original>
